<compile_context>
chip_gen: v7x
topology: tpu7x:2x2x1
jax: 0.10.0
libtpu: 0.0.40
codegen_flags: <defaults>
</compile_context>

<pallas_src>
import math
from functools import partial

import jax
import jax.numpy as jnp
from jax.experimental import pallas as pl
from jax.experimental.pallas import tpu as pltpu


# Explicit scoped-VMEM limit: above v5e's 16 MiB default, below v7x's 64 MiB
# physical so the double-buffered pipeline keeps headroom on every generation.
VMEM_LIMIT = 48 * 1024 * 1024


# ----------------------------------------------------------------------------
# helpers
# ----------------------------------------------------------------------------
def _round_up(x, m):
    return ((x + m - 1) // m) * m


def _pick_tile(dim, candidates):
    """Largest candidate tile that divides dim; else the full dim (always legal)."""
    for t in candidates:
        if t <= dim and dim % t == 0:
            return t
    return dim


def _erf_approx(x):
    # Abramowitz & Stegun 7.1.26 rational approximation (|err| ~ 1.5e-7).
    a1, a2, a3, a4, a5 = (0.254829592, -0.284496736, 1.421413741,
                          -1.453152027, 1.061405429)
    p = 0.3275911
    sgn = jnp.where(x >= 0.0, 1.0, -1.0)
    ax = jnp.abs(x)
    t = pl.reciprocal(1.0 + p * ax, approx=True)      # EUP slot, not VPU divide
    poly = ((((a5 * t + a4) * t + a3) * t + a2) * t + a1) * t
    return sgn * (1.0 - poly * jnp.exp(-ax * ax))


def _gelu_erf(x):
    # Exact-GELU form (PyTorch nn.GELU default), via erf approximation above.
    return 0.5 * x * (1.0 + _erf_approx(x * 0.7071067811865476))


# ----------------------------------------------------------------------------
# fused (LN ->) matmul (-> bias -> GELU -> residual) kernel
# ----------------------------------------------------------------------------
def _matmul_kernel(*refs, act, has_bias, has_res, has_ln, eps):
    it = iter(refs)
    x_ref = next(it)
    w_ref = next(it)
    g_ref = bln_ref = b_ref = r_ref = None
    if has_ln:
        g_ref = next(it)
        bln_ref = next(it)
    if has_bias:
        b_ref = next(it)
    if has_res:
        r_ref = next(it)
    o_ref = next(it)
    acc_ref = next(it)

    k = pl.program_id(2)

    @pl.when(k == 0)
    def _init():
        acc_ref[...] = jnp.zeros_like(acc_ref)

    x = x_ref[...]
    if has_ln:
        # Fused LayerNorm prologue (tk == K, so the full feature row is here).
        xf = x.astype(jnp.float32)
        mu = jnp.mean(xf, axis=-1, keepdims=True)
        xc = xf - mu
        var = jnp.mean(xc * xc, axis=-1, keepdims=True)
        x = (xc * jax.lax.rsqrt(var + eps) * g_ref[...]
             + bln_ref[...]).astype(w_ref.dtype)
    else:
        x = x.astype(w_ref.dtype)

    acc_ref[...] += jnp.dot(x, w_ref[...], preferred_element_type=jnp.float32)

    @pl.when(k == pl.num_programs(2) - 1)
    def _finalize():
        y = acc_ref[...]
        if has_bias:
            y = y + b_ref[...]
        if act == "gelu":
            y = _gelu_erf(y)
        if has_res:
            y = y + r_ref[...].astype(jnp.float32)
        o_ref[...] = y.astype(o_ref.dtype)


def linear(x, w, b=None, act=None, residual=None, ln=None,
           tm=512, tn=1024, tk=512, ln_eps=1e-5):
    """y = act(layernorm?(x) @ w + b) + residual.

    x:(M,K) bf16, w:(K,N) bf16, b:(N,) f32, residual:(M,N) bf16, ln=(g,b) f32.
    No activation padding: M/N/K either tile evenly or use full-dim blocks.
    """
    M, K = x.shape
    K2, N = w.shape
    assert K == K2

    tm = _pick_tile(M, (tm, 256, 128, 64, 32, 16))
    tn = _pick_tile(N, (tn, 512, 256, 128))
    if ln is not None or K % 128 != 0:
        tk = K                  # LN fusion needs the whole row; odd K -> full block
    else:
        tk = _pick_tile(K, (tk, 256, 128))

    args = [x, w]
    in_specs = [
        pl.BlockSpec((tm, tk), lambda i, j, k: (i, k)),
        pl.BlockSpec((tk, tn), lambda i, j, k: (k, j)),
    ]
    if ln is not None:
        g, bb = ln
        args += [g.reshape(1, K).astype(jnp.float32),
                 bb.reshape(1, K).astype(jnp.float32)]
        in_specs += [pl.BlockSpec((1, tk), lambda i, j, k: (0, k)),
                     pl.BlockSpec((1, tk), lambda i, j, k: (0, k))]
    if b is not None:
        args.append(b.reshape(1, N).astype(jnp.float32))
        in_specs.append(pl.BlockSpec((1, tn), lambda i, j, k: (0, j)))
    if residual is not None:
        args.append(residual)
        in_specs.append(pl.BlockSpec((tm, tn), lambda i, j, k: (i, j)))

    # TODO(synk): pipeline_mode=pl.Buffered(3) on the weight spec for K/tk <= 2
    # once multi-buffer BlockSpecs are confirmed on the target jax version.
    return pl.pallas_call(
        partial(_matmul_kernel, act=act, has_bias=b is not None,
                has_res=residual is not None, has_ln=ln is not None, eps=ln_eps),
        grid_spec=pltpu.PrefetchScalarGridSpec(
            num_scalar_prefetch=0,
            grid=(M // tm, N // tn, K // tk),
            in_specs=in_specs,
            out_specs=pl.BlockSpec((tm, tn), lambda i, j, k: (i, j)),
            scratch_shapes=[pltpu.VMEM((tm, tn), jnp.float32)],
        ),
        out_shape=jax.ShapeDtypeStruct((M, N), x.dtype),
        compiler_params=pltpu.CompilerParams(
            dimension_semantics=("parallel", "parallel", "arbitrary"),
            vmem_limit_bytes=VMEM_LIMIT),
    )(*args)


# ----------------------------------------------------------------------------
# standalone LayerNorm (only used for ln_pre; block LNs are fused into matmuls)
# ----------------------------------------------------------------------------
def _ln_kernel(x_ref, g_ref, b_ref, o_ref, *, eps):
    x = x_ref[...].astype(jnp.float32)
    mu = jnp.mean(x, axis=-1, keepdims=True)
    xc = x - mu
    var = jnp.mean(xc * xc, axis=-1, keepdims=True)
    o_ref[...] = (xc * jax.lax.rsqrt(var + eps) * g_ref[...]
                  + b_ref[...]).astype(o_ref.dtype)


def layernorm(x, g, b, eps=1e-5):
    shp = x.shape
    D = shp[-1]
    x2 = x.reshape(-1, D)
    M = x2.shape[0]
    tm = _pick_tile(M, (512, 256, 128, 64, 32, 16))
    out = pl.pallas_call(
        partial(_ln_kernel, eps=eps),
        grid=(M // tm,),
        in_specs=[pl.BlockSpec((tm, D), lambda i: (i, 0)),
                  pl.BlockSpec((1, D), lambda i: (0, 0)),
                  pl.BlockSpec((1, D), lambda i: (0, 0))],
        out_specs=pl.BlockSpec((tm, D), lambda i: (i, 0)),
        out_shape=jax.ShapeDtypeStruct((M, D), x.dtype),
        compiler_params=pltpu.CompilerParams(
            dimension_semantics=("parallel",),
            vmem_limit_bytes=VMEM_LIMIT),
    )(x2, g.reshape(1, D).astype(jnp.float32), b.reshape(1, D).astype(jnp.float32))
    return out.reshape(shp)


# ----------------------------------------------------------------------------
# attention over the packed (B, S, 3D) QKV buffer
# ----------------------------------------------------------------------------
def _attn_kernel(*refs, hp, dh, qo, ko, vo, s_valid, causal):
    if len(refs) == 4:
        q_ref, k_ref, v_ref, o_ref = refs
    else:                               # fallback: one packed block, slice in-kernel
        q_ref = k_ref = v_ref = refs[0]
        o_ref = refs[1]
    S = q_ref.shape[1]

    mask = None
    if causal or s_valid < S:
        row = jax.lax.broadcasted_iota(jnp.int32, (S, S), 0)
        col = jax.lax.broadcasted_iota(jnp.int32, (S, S), 1)
        mask = col < s_valid                       # padded keys never attended
        if causal:
            mask = jnp.logical_and(mask, col <= row)

    outs = []
    for h in range(hp):                            # static head loop (ref slices)
        q = q_ref[0, :, pl.ds(qo + h * dh, dh)]    # bf16 (S, Dh); 1/sqrt(Dh) folded in w_in
        k = k_ref[0, :, pl.ds(ko + h * dh, dh)]
        v = v_ref[0, :, pl.ds(vo + h * dh, dh)]
        s = jax.lax.dot_general(q, k, (((1,), (1,)), ((), ())),
                                preferred_element_type=jnp.float32)    # (S, S)
        if mask is not None:
            s = jnp.where(mask, s, -1e30)
        m = jnp.max(s, axis=-1, keepdims=True)
        p = jnp.exp(s - m)
        denom = jnp.sum(p, axis=-1, keepdims=True)
        p = p * pl.reciprocal(denom, approx=True)
        outs.append(jnp.dot(p.astype(v.dtype), v, preferred_element_type=jnp.float32))

    # Single lane-dense (S, hp*Dh) store per head group.
    o = outs[0] if hp == 1 else jnp.concatenate(outs, axis=-1)
    o_ref[0] = o.astype(o_ref.dtype)


def _head_group(heads, dh):
    """Smallest hp dividing heads with hp*dh a multiple of 128 (lane-dense blocks)."""
    for hp in range(1, heads + 1):
        if heads % hp == 0 and (hp * dh) % 128 == 0:
            return hp
    return None


def sdpa_packed(qkv, heads, causal, s_valid):
    """qkv: (B, Sp, 3D) packed QKV -> (B, Sp, D) attention output."""
    B, Sp, D3 = qkv.shape
    D = D3 // 3
    dh = D // heads
    hp = _head_group(heads, dh) if D % 128 == 0 else None

    if hp is not None:
        G = heads // hp            # head groups; grid (B, G) keeps both TCs busy
        hw = hp * dh
        return pl.pallas_call(
            partial(_attn_kernel, hp=hp, dh=dh, qo=0, ko=0, vo=0,
                    s_valid=s_valid, causal=causal),
            grid=(B, G),
            in_specs=[
                pl.BlockSpec((1, Sp, hw), lambda b, g: (b, 0, g)),                 # Q cols
                pl.BlockSpec((1, Sp, hw), lambda b, g, G=G: (b, 0, G + g)),        # K cols
                pl.BlockSpec((1, Sp, hw), lambda b, g, G=G: (b, 0, 2 * G + g)),    # V cols
            ],
            out_specs=pl.BlockSpec((1, Sp, hw), lambda b, g: (b, 0, g)),
            out_shape=jax.ShapeDtypeStruct((B, Sp, D), qkv.dtype),
            compiler_params=pltpu.CompilerParams(
                dimension_semantics=("parallel", "parallel"),
                vmem_limit_bytes=VMEM_LIMIT),
        )(qkv, qkv, qkv)

    # Fallback for non-128-aligned widths: whole packed block, slice per head.
    # TODO(synk): flash-style q/kv tiling (online softmax) for very long sequences.
    return pl.pallas_call(
        partial(_attn_kernel, hp=heads, dh=dh, qo=0, ko=D, vo=2 * D,
                s_valid=s_valid, causal=causal),
        grid=(B,),
        in_specs=[pl.BlockSpec((1, Sp, D3), lambda b: (b, 0, 0))],
        out_specs=pl.BlockSpec((1, Sp, D), lambda b: (b, 0, 0)),
        out_shape=jax.ShapeDtypeStruct((B, Sp, D), qkv.dtype),
        compiler_params=pltpu.CompilerParams(
            dimension_semantics=("parallel",),
            vmem_limit_bytes=VMEM_LIMIT),
    )(qkv)


# ----------------------------------------------------------------------------
# model glue (heavy math in the Pallas kernels above)
# ----------------------------------------------------------------------------
def _ln_rows(x, g, b, eps=1e-5):
    # Tiny per-row LN on pooled tokens (ln_post / ln_final) in plain XLA;
    # identical to LN-then-pool since LayerNorm is per-token.
    x = x.astype(jnp.float32)
    mu = jnp.mean(x, axis=-1, keepdims=True)
    xc = x - mu
    var = jnp.mean(xc * xc, axis=-1, keepdims=True)
    return xc * jax.lax.rsqrt(var + eps) * g + b


def l2_normalize(x, eps=1e-12):
    n = jnp.maximum(jnp.sqrt(jnp.sum(x * x, axis=-1, keepdims=True)), eps)
    return x / n


def pad_seq(x, mult=16):
    """Pad the token axis ONCE; activations stay padded through the transformer."""
    B, S, D = x.shape
    Sp = _round_up(max(S, mult), mult)
    if Sp != S:
        x = jnp.pad(x, ((0, 0), (0, Sp - S), (0, 0)))
    return x, S


def residual_block(xf, B, Sp, p, causal, s_valid):
    D = xf.shape[-1]
    a = p["attn"]
    qkv = linear(xf, a["w_in"], a["b_in"], ln=(p["ln1_g"], p["ln1_b"]))   # LN1 fused
    o = sdpa_packed(qkv.reshape(B, Sp, 3 * D), a["heads"], causal, s_valid)
    xf = linear(o.reshape(B * Sp, D), a["w_out"], a["b_out"], residual=xf)  # +res fused
    h = linear(xf, p["w_fc"], p["b_fc"], act="gelu",
               ln=(p["ln2_g"], p["ln2_b"]))                               # LN2+GELU fused
    xf = linear(h, p["w_proj"], p["b_proj"], residual=xf)                 # +res fused
    return xf


def transformer(x, blocks, causal, s_valid):
    B, Sp, D = x.shape
    xf = x.reshape(B * Sp, D)
    for p in blocks:
        xf = residual_block(xf, B, Sp, p, causal, s_valid)
    return xf.reshape(B, Sp, D)


def patch_embed(images, v):
    """Conv2d(3, width, kernel=patch, stride=patch, bias=False) via im2col+matmul."""
    B, C, H, W = images.shape
    P = v["patch"]
    Hg, Wg = H // P, W // P
    x = images.reshape(B, C, Hg, P, Wg, P).transpose(0, 2, 4, 1, 3, 5)
    x = x.reshape(B * Hg * Wg, C * P * P).astype(jnp.bfloat16)
    out = linear(x, v["conv1_w2"])            # bias-free, full-K block (K = C*P*P)
    return out.reshape(B, Hg * Wg, -1)


def encode_image(params, images, tasks, mode="first", normalize=False):
    v = params["visual"]
    x = patch_embed(images, v)                                        # (B, Np, D) bf16
    B, _, D = x.shape
    cls = jnp.broadcast_to(v["class_embedding"].reshape(1, 1, D), (B, 1, D))
    x = jnp.concatenate([cls, x], axis=1) + v["pos_embedding"][None]
    task_embeds = jnp.stack([w[tasks] for w in params["task_embeddings"]], axis=1)
    if mode == "first":
        x = jnp.concatenate([task_embeds, x], axis=1)
    elif mode == "second":
        x = jnp.concatenate([x[:, :1], task_embeds, x[:, 1:]], axis=1)
    elif mode == "third":
        x = jnp.concatenate([x, task_embeds], axis=1)

    x, s_valid = pad_seq(x)                    # one-time pad; stays padded throughout
    # patch_dropout with p=0 is identity
    x = layernorm(x, v["ln_pre_g"], v["ln_pre_b"])
    x = transformer(x, v["blocks"], causal=False, s_valid=s_valid)
    # attn_pool is None, final_ln_after_pool=False -> ln_post then _global_pool('tok')
    pooled = x[:, 0, :].astype(jnp.float32)
    pooled = _ln_rows(pooled, v["ln_post_g"], v["ln_post_b"])
    pooled = pooled @ v["proj"]                # tiny (B,D)x(D,out) -> plain XLA
    return l2_normalize(pooled) if normalize else pooled


def encode_text(params, texts, normalize=False):
    t = params["text"]
    x = t["token_embedding"][texts] + t["pos_embedding"][None]       # gather (glue)
    x, s_valid = pad_seq(x)
    x = transformer(x, t["blocks"], causal=True, s_valid=s_valid)
    eot = jnp.argmax(texts, axis=-1)           # open_clip: token at argmax(text)
    pooled = x[jnp.arange(x.shape[0]), eot].astype(jnp.float32)
    pooled = _ln_rows(pooled, t["ln_final_g"], t["ln_final_b"])
    pooled = pooled @ t["text_projection"]     # tiny -> XLA
    return l2_normalize(pooled) if normalize else pooled


def clip_wrapper_forward(params, images, texts, tasks):
    """CLIPWrapper.forward with output_dict=False, logit_bias=None."""
    image_features = (
        encode_image(params, images, tasks, mode=params["method"], normalize=True)
        if images is not None else None
    )
    text_features = (
        encode_text(params, texts, normalize=True) if texts is not None else None
    )
    return image_features, text_features, jnp.exp(params["logit_scale"])


# ----------------------------------------------------------------------------
# Deterministic parameter init (synthetic weights, pre-prepared for the kernels:
# bf16 weights, conv reshaped to matmul, 1/sqrt(Dh) folded into the Q projection)
# ----------------------------------------------------------------------------
def init_params(key, *, num_tasks=3, num_embeds=2, width=128, heads=4, layers=2,
                patch=8, image_size=32, out_dim=64, vocab=64, ctx=16,
                text_width=128, text_heads=4, text_layers=2):
    keys = iter(jax.random.split(key, 512))

    def nrm(shape, scale=0.02, dtype=jnp.bfloat16):
        return (jax.random.normal(next(keys), shape, jnp.float32) * scale).astype(dtype)

    def block_params(d, h):
        dh = d // h
        qk_scale = 1.0 / math.sqrt(dh)
        w_in = jax.random.normal(next(keys), (d, 3 * d), jnp.float32) * 0.02
        b_in = jnp.zeros((3 * d,), jnp.float32)
        # fold the attention scale into the Q slice (removes per-head multiply)
        w_in = w_in.at[:, :d].multiply(qk_scale)
        b_in = b_in.at[:d].multiply(qk_scale)
        return {
            "ln1_g": jnp.ones((d,), jnp.float32), "ln1_b": jnp.zeros((d,), jnp.float32),
            "ln2_g": jnp.ones((d,), jnp.float32), "ln2_b": jnp.zeros((d,), jnp.float32),
            "attn": {
                "heads": h,
                "w_in": w_in.astype(jnp.bfloat16), "b_in": b_in,
                "w_out": nrm((d, d)), "b_out": jnp.zeros((d,), jnp.float32),
            },
            "w_fc": nrm((d, 4 * d)), "b_fc": jnp.zeros((4 * d,), jnp.float32),
            "w_proj": nrm((4 * d, d)), "b_proj": jnp.zeros((d,), jnp.float32),
        }

    grid = image_size // patch
    num_patches = grid * grid
    conv_w = jax.random.normal(next(keys), (width, 3, patch, patch), jnp.float32) * 0.02
    return {
        "method": "first",
        "logit_scale": jnp.asarray(math.log(1.0 / 0.07), jnp.float32),
        # nn.ModuleList of num_embeds x nn.Embedding(num_tasks, clip_dim=width)
        "task_embeddings": [nrm((num_tasks, width)) for _ in range(num_embeds)],
        "visual": {
            "patch": patch,
            # Conv2d weight (O,I,kh,kw) pre-reshaped once to a (C*P*P, width) matmul
            "conv1_w2": conv_w.reshape(width, -1).T.astype(jnp.bfloat16),
            "class_embedding": nrm((width,)),
            "pos_embedding": nrm((num_patches + 1, width)),
            "ln_pre_g": jnp.ones((width,), jnp.float32),
            "ln_pre_b": jnp.zeros((width,), jnp.float32),
            "ln_post_g": jnp.ones((width,), jnp.float32),
            "ln_post_b": jnp.zeros((width,), jnp.float32),
            "blocks": [block_params(width, heads) for _ in range(layers)],
            "proj": jax.random.normal(next(keys), (width, out_dim), jnp.float32) * 0.02,
        },
        "text": {
            "token_embedding": nrm((vocab, text_width)),
            "pos_embedding": nrm((ctx, text_width)),
            "blocks": [block_params(text_width, text_heads) for _ in range(text_layers)],
            "ln_final_g": jnp.ones((text_width,), jnp.float32),
            "ln_final_b": jnp.zeros((text_width,), jnp.float32),
            "text_projection": jax.random.normal(next(keys), (text_width, out_dim),
                                                 jnp.float32) * 0.02,
        },
    }


# ----------------------------------------------------------------------------
if __name__ == "__main__":
    key = jax.random.PRNGKey(0)
    kp, ki, kt = jax.random.split(key, 3)
    params = init_params(kp)

    B = 2
    images = jax.random.normal(ki, (B, 3, 32, 32), jnp.float32)       # NCHW
    texts = jax.random.randint(kt, (B, 16), 1, 63, dtype=jnp.int32)
    texts = texts.at[:, -1].set(63)                                    # EOT = max token id
    tasks = jnp.array([0, 2], jnp.int32)

    img_f, txt_f, logit_scale = clip_wrapper_forward(params, images, texts, tasks)
    jax.block_until_ready((img_f, txt_f, logit_scale))

    assert img_f.shape == (B, 64) and txt_f.shape == (B, 64)
    assert bool(jnp.all(jnp.isfinite(img_f))) and bool(jnp.all(jnp.isfinite(txt_f)))
    print("KERNEL_OK")
</pallas_src>

<mosaic_0001>
module attributes {stable_mosaic.version = 11 : i64} {
  func.func @_matmul_kernel(%arg0: i32, %arg1: i32, %arg2: i32, %arg3: memref<32x192xbf16, #tpu.memory_space<vmem>>, %arg4: memref<192x128xbf16, #tpu.memory_space<vmem>>, %arg5: memref<32x128xbf16, #tpu.memory_space<vmem>>, %arg6: memref<32x128xf32, #tpu.memory_space<vmem>>) attributes {dimension_semantics = [#tpu.dimension_semantics<parallel>, #tpu.dimension_semantics<parallel>, #tpu.dimension_semantics<arbitrary>], iteration_bounds = array<i64: 1, 1, 1>, scalar_prefetch = 0 : i64, scratch_operands = 1 : i64, tpu.core_type = #tpu.core_type<tc>, window_params = [{transform_indices = @transform_0, window_bounds = array<i64: 32, 192>}, {transform_indices = @transform_1, window_bounds = array<i64: 192, 128>}, {transform_indices = @transform_2, window_bounds = array<i64: 32, 128>}]} {
    %c0_i32 = arith.constant 0 : i32
    %0 = arith.cmpi eq, %arg2, %c0_i32 : i32
    %1 = arith.extui %0 : i1 to i32
    %c0_i32_0 = arith.constant 0 : i32
    %2 = arith.cmpi ne, %1, %c0_i32_0 : i32
    scf.if %2 {
      %cst_10 = arith.constant 0.000000e+00 : f32
      %12 = vector.broadcast %cst_10 : f32 to vector<32x128xf32>
      %c0_11 = arith.constant 0 : index
      %c0_12 = arith.constant 0 : index
      %13 = vector.load %arg6[%c0_11, %c0_12] : memref<32x128xf32, #tpu.memory_space<vmem>>, vector<32x128xf32>
      tpu.vector_store %arg6[%c0_11, %c0_12], %12 {strides = array<i32>} : memref<32x128xf32, #tpu.memory_space<vmem>>, vector<32x128xf32>,
    } else {
    }
    %c0 = arith.constant 0 : index
    %c0_1 = arith.constant 0 : index
    %3 = vector.load %arg3[%c0, %c0_1] : memref<32x192xbf16, #tpu.memory_space<vmem>>, vector<32x192xbf16>
    %c0_2 = arith.constant 0 : index
    %c0_3 = arith.constant 0 : index
    %4 = vector.load %arg6[%c0_2, %c0_3] : memref<32x128xf32, #tpu.memory_space<vmem>>, vector<32x128xf32>
    %c0_4 = arith.constant 0 : index
    %c0_5 = arith.constant 0 : index
    %5 = vector.load %arg4[%c0_4, %c0_5] : memref<192x128xbf16, #tpu.memory_space<vmem>>, vector<192x128xbf16>
    %cst = arith.constant dense<0.000000e+00> : vector<32x128xf32>
    %6 = tpu.matmul %3, %5, %cst {dimension_numbers = #tpu.dot_dimension_numbers<[1], [0], [0], [1], [0, 0, 1, 1], [], []>} : vector<32x192xbf16>, vector<192x128xbf16>, vector<32x128xf32> -> vector<32x128xf32>
    %7 = arith.addf %4, %6 : vector<32x128xf32>
    %c0_6 = arith.constant 0 : index
    %c0_7 = arith.constant 0 : index
    %8 = vector.load %arg6[%c0_6, %c0_7] : memref<32x128xf32, #tpu.memory_space<vmem>>, vector<32x128xf32>
    tpu.vector_store %arg6[%c0_6, %c0_7], %7 {strides = array<i32>} : memref<32x128xf32, #tpu.memory_space<vmem>>, vector<32x128xf32>,
    %c0_i32_8 = arith.constant 0 : i32
    %9 = arith.cmpi eq, %arg2, %c0_i32_8 : i32
    %10 = arith.extui %9 : i1 to i32
    %c0_i32_9 = arith.constant 0 : i32
    %11 = arith.cmpi ne, %10, %c0_i32_9 : i32
    scf.if %11 {
      %c0_10 = arith.constant 0 : index
      %c0_11 = arith.constant 0 : index
      %12 = vector.load %arg6[%c0_10, %c0_11] : memref<32x128xf32, #tpu.memory_space<vmem>>, vector<32x128xf32>
      %13 = arith.truncf %12 : vector<32x128xf32> to vector<32x128xbf16>
      %c0_12 = arith.constant 0 : index
      %c0_13 = arith.constant 0 : index
      %14 = vector.load %arg5[%c0_12, %c0_13] : memref<32x128xbf16, #tpu.memory_space<vmem>>, vector<32x128xbf16>
      tpu.vector_store %arg5[%c0_12, %c0_13], %13 {strides = array<i32>} : memref<32x128xbf16, #tpu.memory_space<vmem>>, vector<32x128xbf16>,
    } else {
    }
    return
  }
  func.func @transform_0(%arg0: i32, %arg1: i32, %arg2: i32) -> (i32, i32) {
    %c0_i32 = arith.constant 0 : i32
    return %arg0, %arg2 : i32, i32
  }
  func.func @transform_1(%arg0: i32, %arg1: i32, %arg2: i32) -> (i32, i32) {
    %c0_i32 = arith.constant 0 : i32
    return %arg2, %arg1 : i32, i32
  }
  func.func @transform_2(%arg0: i32, %arg1: i32, %arg2: i32) -> (i32, i32) {
    %c0_i32 = arith.constant 0 : i32
    return %arg0, %arg1 : i32, i32
  }
}

</mosaic_0001>

<llo_original>
// kernel: tpu_custom_call.1
$region0: #{tpu_custom_call.1}
  #allocation0 [shape = 'u32[]', space=smem, size = 0x4, offset = 0x4, fixed_abs, tag = 'smem constant byte address 0x4 - core index']
  #allocation1 [shape = 'u32[144,128]{1,0:T(1,128)}', space=vmem, size = 0x12000, scoped, tag = 'internal scratch']
  #allocation2 [shape = 'f32[32,128]{1,0:T(8,128)}', space=vmem, size = 0x4000, scoped, tag = 'scratch operand']
  %s0 = inlined_call_operand.hbm [shape: bf16[32,192], index: 0, kind: input, shape index: {}]
  %s1 = inlined_call_operand.hbm [shape: bf16[192,128], index: 1, kind: input, shape index: {}]
  %s2 = inlined_call_operand.hbm [shape: bf16[32,128], index: 2, kind: output, shape index: {}]
  %s3 = sld [smem:[#allocation0]]
  $region34: #{tpu_custom_call.1} parent=0
    _
  %s5 = ssub.s32 1, %s3
  %s6 = scalar_select 0, %s5, %s3
  $region1: #{tpu_custom_call.1} parent=0
    #allocation3 [shape = 'u8[16384]{0}', space=vmem, size = 0x4000, scoped, tag = 'input window, operand 0, single buffered']
    #allocation4 [shape = 's32[1]{0}', space=sflag, size = 0x4, scoped, tag = 'scoped memory for tpu_custom_call.1']
    #allocation5 [shape = 's32[1]{0}', space=sflag, size = 0x4, scoped, tag = 'scoped memory for tpu_custom_call.1']
    #allocation6 [shape = 'u8[49152]{0}', space=vmem, size = 0xc000, scoped, tag = 'input window, operand 1, single buffered']
    #allocation7 [shape = 's32[1]{0}', space=sflag, size = 0x4, scoped, tag = 'scoped memory for tpu_custom_call.1']
    #allocation8 [shape = 'u8[8192]{0}', space=vmem, size = 0x2000, scoped, tag = 'output window, operand 0, single buffered']
    %7 = vsyncpa [#allocation4], 0
    %8 = vsyncpa [#allocation7], 0
    %9 = vsyncpa [#allocation5], 0
    // Predicated region
    $region2: #{tpu_custom_call.1} parent=1 // pred_check
      _
    $region3: #{tpu_custom_call.1} parent=1 // pred_check_branch
      %11 = sbr.rel (0) target = $region5
    $region4: #{tpu_custom_call.1} parent=1 // pred_region
      %s13 = ssub.s32 512, 512
      %14 = vsyncadd [#allocation4], %s13
      %s15 = sshll.u32 [#allocation3], 4
      %s16 = int_to_ptr.vmem [resolvable:$true] %s15
      %21 = dma.hbm_to_vmem [thread:$0]  %s0, 512, %s16, [#allocation4], 128, 128, 8
    $region5: #{tpu_custom_call.1} parent=1 // pred_fallthru
      _
    // Predicated region
    $region6: #{tpu_custom_call.1} parent=1 // pred_check
      _
    $region7: #{tpu_custom_call.1} parent=1 // pred_check_branch
      %23 = sbr.rel (0) target = $region9
    $region8: #{tpu_custom_call.1} parent=1 // pred_region
      %s25 = ssub.s32 1536, 1536
      %26 = vsyncadd [#allocation7], %s25
      %s27 = sshll.u32 [#allocation6], 4
      %s28 = int_to_ptr.vmem [resolvable:$true] %s27
      %33 = dma.hbm_to_vmem [thread:$0]  %s1, 1536, %s28, [#allocation7], 64, 64, 4
    $region9: #{tpu_custom_call.1} parent=1 // pred_fallthru
      _
    // Predicated region
    $region10: #{tpu_custom_call.1} parent=1 // pred_check
      _
    $region11: #{tpu_custom_call.1} parent=1 // pred_check_branch
      %35 = sbr.rel (0) target = $region13
    $region12: #{tpu_custom_call.1} parent=1 // pred_region
      %36 = dma.done [#allocation4], 512
    $region13: #{tpu_custom_call.1} parent=1 // pred_fallthru
      _
    // Predicated region
    $region14: #{tpu_custom_call.1} parent=1 // pred_check
      _
    $region15: #{tpu_custom_call.1} parent=1 // pred_check_branch
      %38 = sbr.rel (0) target = $region17
    $region16: #{tpu_custom_call.1} parent=1 // pred_region
      %39 = dma.done [#allocation7], 1536
    $region17: #{tpu_custom_call.1} parent=1 // pred_fallthru
      _
    %p41 = scmp.eq.s32.totalorder 0, 0
    // Predicated region
    $region18: #{tpu_custom_call.1} parent=1 // pred_check
      %p42 = pneg %p41
    $region19: #{tpu_custom_call.1} parent=1 // pred_check_branch
      %44 = sbr.rel (%p42) target = $region21
    $region20: #{tpu_custom_call.1} parent=1 // pred_region
      %45 = vst [vmem:[#allocation2] sm:$0xff] 0.0
      %46 = vst [vmem:[#allocation2 + $0x8] sm:$0xff] 0.0
      %47 = vst [vmem:[#allocation2 + $0x10] sm:$0xff] 0.0
      %48 = vst [vmem:[#allocation2 + $0x18] sm:$0xff] 0.0
    $region21: #{tpu_custom_call.1} parent=1 // pred_fallthru
      _
    %v49 = vld [vmem:[#allocation3] sm:$0xff]
    %v50 = vld [vmem:[#allocation3 + $0x8] sm:$0xff]
    %v51 = vld [vmem:[#allocation3 + $0x10] sm:$0xff]
    %v52 = vld [vmem:[#allocation3 + $0x18] sm:$0xff]
    %v53 = vld [vmem:[#allocation2] sm:$0xff]
    %v54 = vld [vmem:[#allocation2 + $0x8] sm:$0xff]
    %v55 = vld [vmem:[#allocation2 + $0x10] sm:$0xff]
    %v56 = vld [vmem:[#allocation2 + $0x18] sm:$0xff]
    %v57 = vld [vmem:[#allocation6] sm:$0xf]
    %v58 = vld [vmem:[#allocation6 + $0x4] sm:$0xf]
    %v59 = vld [vmem:[#allocation6 + $0x8] sm:$0xf]
    %v60 = vld [vmem:[#allocation6 + $0xc] sm:$0xf]
    %v61 = vld [vmem:[#allocation6 + $0x10] sm:$0xf]
    %v62 = vld [vmem:[#allocation6 + $0x14] sm:$0xf]
    %v63 = vld [vmem:[#allocation6 + $0x18] sm:$0xf]
    %v64 = vld [vmem:[#allocation6 + $0x1c] sm:$0xf]
    %v65 = vld [vmem:[#allocation6 + $0x20] sm:$0xf]
    %v66 = vld [vmem:[#allocation6 + $0x24] sm:$0xf]
    %v67 = vld [vmem:[#allocation6 + $0x28] sm:$0xf]
    %v68 = vld [vmem:[#allocation6 + $0x2c] sm:$0xf]
    %v69 = vld [vmem:[#allocation6 + $0x30] sm:$0xf]
    %v70 = vld [vmem:[#allocation6 + $0x34] sm:$0xf]
    %v71 = vld [vmem:[#allocation6 + $0x38] sm:$0xf]
    %v72 = vld [vmem:[#allocation6 + $0x3c] sm:$0xf]
    %v73 = vld [vmem:[#allocation6 + $0x40] sm:$0xf]
    %v74 = vld [vmem:[#allocation6 + $0x44] sm:$0xf]
    %v75 = vld [vmem:[#allocation6 + $0x48] sm:$0xf]
    %v76 = vld [vmem:[#allocation6 + $0x4c] sm:$0xf]
    %v77 = vld [vmem:[#allocation6 + $0x50] sm:$0xf]
    %v78 = vld [vmem:[#allocation6 + $0x54] sm:$0xf]
    %v79 = vld [vmem:[#allocation6 + $0x58] sm:$0xf]
    %v80 = vld [vmem:[#allocation6 + $0x5c] sm:$0xf]
    %v85 = vunpack.c.l.b16 %v49
    %v86 = vunpack.c.h.b16 %v49
    %v87 = vunpack.c.l.b16 %v50
    %v88 = vunpack.c.h.b16 %v50
    %v89 = vunpack.c.l.b16 %v51
    %v90 = vunpack.c.h.b16 %v51
    %v91 = vunpack.c.l.b16 %v52
    %v92 = vunpack.c.h.b16 %v52
    %v93 = vpack.c.b16 %v87, %v85
    %v94 = vpack.c.b16 %v88, %v86
    %v95 = vpack.c.b16 %v91, %v89
    %v96 = vpack.c.b16 %v92, %v90
    %v123 = vunpack.c.l.b16 %v57
    %v124 = vunpack.c.l.b16 %v58
    %v125 = vunpack.c.l.b16 %v59
    %v126 = vunpack.c.l.b16 %v60
    %v127 = vunpack.c.l.b16 %v61
    %v128 = vunpack.c.l.b16 %v62
    %v129 = vunpack.c.l.b16 %v63
    %v130 = vunpack.c.l.b16 %v64
    %v131 = vunpack.c.l.b16 %v65
    %v132 = vunpack.c.l.b16 %v66
    %v133 = vunpack.c.l.b16 %v67
    %v134 = vunpack.c.l.b16 %v68
    %v135 = vunpack.c.l.b16 %v69
    %v136 = vunpack.c.l.b16 %v70
    %v137 = vunpack.c.l.b16 %v71
    %v138 = vunpack.c.l.b16 %v72
    %v139 = vunpack.c.l.b16 %v73
    %v140 = vunpack.c.l.b16 %v74
    %v141 = vunpack.c.l.b16 %v75
    %v142 = vunpack.c.l.b16 %v76
    %v143 = vunpack.c.l.b16 %v77
    %v144 = vunpack.c.l.b16 %v78
    %v145 = vunpack.c.l.b16 %v79
    %v146 = vunpack.c.l.b16 %v80
    %v147 = vpack.c.b16 %v124, %v123
    %v148 = vpack.c.b16 %v126, %v125
    %v149 = vpack.c.b16 %v128, %v127
    %v150 = vpack.c.b16 %v130, %v129
    %v151 = vpack.c.b16 %v132, %v131
    %v152 = vpack.c.b16 %v134, %v133
    %v153 = vpack.c.b16 %v136, %v135
    %v154 = vpack.c.b16 %v138, %v137
    %v155 = vpack.c.b16 %v140, %v139
    %v156 = vpack.c.b16 %v142, %v141
    %v157 = vpack.c.b16 %v144, %v143
    %v158 = vpack.c.b16 %v146, %v145
    %vm171 = vcmask 523264
    %v173 = vsel %vm171, %v94, 0
    %v176 = vsel %vm171, %v96, 0
    %178 = vmatprep.subr.bf16.mxu0 0
    %179 = vmatpush1.bf16.msra.mxu0 %v147
    %180 = vmatprep.subr.bf16.mxu0 0
    %181 = vmatpush1.bf16.msra.mxu0 %v148
    %182 = vmatprep.subr.bf16.mxu0 0
    %183 = vmatpush1.bf16.msra.mxu0 %v149
    %184 = vmatprep.subr.bf16.mxu0 0
    %185 = vmatpush1.bf16.msra.mxu0 %v150
    %186 = vmatprep.subr.bf16.mxu0 0
    %187 = vmatpush1.bf16.msra.mxu0 %v151
    %188 = vmatprep.subr.bf16.mxu0 0
    %189 = vmatpush1.bf16.msra.mxu0 %v152
    %190 = vmatprep.subr.bf16.mxu0 0
    %191 = vmatpush1.bf16.msra.mxu0 %v153
    %192 = vmatprep.subr.bf16.mxu0 0
    %193 = vmatpush1.bf16.msra.mxu0 %v154
    %194 = vmatprep.subr.bf16.mxu0 0
    %195 = vmatpush1.bf16.msra.mxu0 %v155
    %196 = vmatprep.subr.bf16.mxu0 0
    %197 = vmatpush1.bf16.msra.mxu0 %v156
    %198 = vmatprep.subr.bf16.mxu0 0
    %199 = vmatpush1.bf16.msra.mxu0 %v157
    %200 = vmatprep.subr.bf16.mxu0 0
    %201 = vmatpush1.bf16.msra.mxu0 %v158
    %202 = vmatprep.subr.bf16.mxu0 0
    %203 = vmatpush1.bf16.msra.mxu0 0
    %204 = vmatprep.subr.bf16.mxu0 0
    %205 = vmatpush1.bf16.msra.mxu0 0
    %206 = vmatprep.subr.bf16.mxu0 0
    %207 = vmatpush1.bf16.msra.mxu0 0
    %208 = vmatprep.subr.bf16.mxu0 0
    %209 = vmatpush1.bf16.msra.mxu0 0
    %210 = vmatprep.mubr.bf16.mxu0 %v173
    %211 = vmatmul.mubr.bf16.gmra.mrb[0].mxu0 %v93
    %v212 = vpop.f32.mrb[0].mxu0
    %v213 = vadd.f32 0.0, %v212
    %v214 = vpop.f32.mrb[0].mxu0
    %v215 = vpop.f32.mrb[0].mxu0
    %v216 = vadd.f32 0.0, %v215
    %v217 = vpop.f32.mrb[0].mxu0
    %218 = vmatprep.mubr.bf16.mxu0 %v176
    %219 = vmatmul.mubr.bf16.gmra.mrb[0].mxu0 %v95
    %v220 = vpop.f32.mrb[0].mxu0
    %v221 = vadd.f32 0.0, %v220
    %v222 = vpop.f32.mrb[0].mxu0
    %v223 = vpop.f32.mrb[0].mxu0
    %v224 = vadd.f32 0.0, %v223
    %v225 = vpop.f32.mrb[0].mxu0
    %226 = vdwg.mxu0
    %v227 = vadd.f32 %v53, %v213
    %v228 = vadd.f32 %v54, %v216
    %v229 = vadd.f32 %v55, %v221
    %v230 = vadd.f32 %v56, %v224
    %231 = vst [vmem:[#allocation2] sm:$0xff] %v227
    %232 = vst [vmem:[#allocation2 + $0x8] sm:$0xff] %v228
    %233 = vst [vmem:[#allocation2 + $0x10] sm:$0xff] %v229
    %234 = vst [vmem:[#allocation2 + $0x18] sm:$0xff] %v230
    // Predicated region
    $region22: #{tpu_custom_call.1} parent=1 // pred_check
      %p235 = pneg %p41
    $region23: #{tpu_custom_call.1} parent=1 // pred_check_branch
      %237 = sbr.rel (%p235) target = $region25
    $region24: #{tpu_custom_call.1} parent=1 // pred_region
      %v238 = vld [vmem:[#allocation2] sm:$0xff]
      %v239 = vld [vmem:[#allocation2 + $0x8] sm:$0xff]
      %v240 = vld [vmem:[#allocation2 + $0x10] sm:$0xff]
      %v241 = vld [vmem:[#allocation2 + $0x18] sm:$0xff]
      %v242 = vpack.c.bf16 %v239, %v238
      %v243 = vpack.c.bf16 %v241, %v240
      %v246 = vunpack.c.l.b16 %v242
      %v247 = vunpack.c.h.b16 %v242
      %v248 = vunpack.c.l.b16 %v243
      %v249 = vunpack.c.h.b16 %v243
      %v250 = vpack.c.b16 %v246, %v246
      %v251 = vpack.c.b16 %v247, %v247
      %v252 = vpack.c.b16 %v248, %v248
      %v253 = vpack.c.b16 %v249, %v249
      %258 = vst [vmem:[#allocation8] sm:$0xf] %v250
      %259 = vst [vmem:[#allocation8 + $0x4] sm:$0xf] %v251
      %260 = vst [vmem:[#allocation8 + $0x8] sm:$0xf] %v252
      %261 = vst [vmem:[#allocation8 + $0xc] sm:$0xf] %v253
    $region25: #{tpu_custom_call.1} parent=1 // pred_fallthru
      _
    // Predicated region
    $region26: #{tpu_custom_call.1} parent=1 // pred_check
      _
    $region27: #{tpu_custom_call.1} parent=1 // pred_check_branch
      %263 = sbr.rel (0) target = $region29
    $region28: #{tpu_custom_call.1} parent=1 // pred_region
      %s265 = ssub.s32 256, 256
      %266 = vsyncadd [#allocation5], %s265
      %s267 = sshll.u32 [#allocation8], 4
      %s268 = int_to_ptr.vmem [resolvable:$true] %s267
      %273 = dma.vmem_to_hbm [thread:$0]  %s268, 256, %s2, [#allocation5], 64, 64, 4
    $region29: #{tpu_custom_call.1} parent=1 // pred_fallthru
      _
    // Predicated region
    $region30: #{tpu_custom_call.1} parent=1 // pred_check
      _
    $region31: #{tpu_custom_call.1} parent=1 // pred_check_branch
      %275 = sbr.rel (0) target = $region33
    $region32: #{tpu_custom_call.1} parent=1 // pred_region
      %276 = dma.done [#allocation5], 256
    $region33: #{tpu_custom_call.1} parent=1 // pred_fallthru
      _
    %277 = vsyncpa [#allocation4], 1
    %278 = vsyncpa [#allocation7], 1
    %279 = vsyncpa [#allocation5], 1

</llo_original>
